<compile_context>
chip_gen: v5e
topology: v5e:2x2
jax: 0.10.0
libtpu: 0.0.40
codegen_flags: <defaults>
</compile_context>

<pallas_src>
import math
import functools

import jax
import jax.numpy as jnp
from jax.experimental import pallas as pl
from jax.experimental.pallas import tpu as pltpu


def _round_up(x, m):
    return (x + m - 1) // m * m


def _conv_bn_relu_kernel(patches_ref, w_ref, bias_ref, o_ref):
    # patches_ref: (TM, KC) bf16   w_ref: (KC, TN) bf16 (BN scale pre-folded)
    # bias_ref: (1, TN) f32        o_ref: (TM, TN) f32
    acc = jnp.dot(patches_ref[...], w_ref[...],
                  preferred_element_type=jnp.float32)
    o_ref[...] = jnp.maximum(acc + bias_ref[...], 0.0).astype(o_ref.dtype)


def _extract_patches_nhwc(x_nhwc, kernel_size, stride, padding):
    """im2col: (N,H,W,Cin) -> (N, OH, OW, K*K*Cin) ordered (ki, kj, cin)."""
    n, h, w, cin = x_nhwc.shape
    k, s, p = kernel_size, stride, padding
    xp = jnp.pad(x_nhwc, ((0, 0), (p, p), (p, p), (0, 0)))
    oh = (h + 2 * p - k) // s + 1
    ow = (w + 2 * p - k) // s + 1
    pieces = []
    for ki in range(k):
        for kj in range(k):
            sl = xp[:, ki:ki + (oh - 1) * s + 1:s, kj:kj + (ow - 1) * s + 1:s, :]
            pieces.append(sl)
    patches = jnp.concatenate(pieces, axis=-1)  # (N, OH, OW, K*K*Cin)
    return patches, oh, ow


def _choose_tm(m_total, kc, tn, bytes_budget=16 * 1024 * 1024):
    """Pick the M tile: biggest that fits the VMEM budget (bf16 patches double-
    buffered + bf16 weights + f32 output), preferring tiles that divide M and
    give >= 2 grid blocks (megacore / v7x dual-TC)."""
    candidates = [1024, 512, 256, 128, 64, 32, 16, 8]
    fitting = [t for t in candidates
               if 2 * t * kc * 2 + 2 * kc * tn * 2 + 2 * t * tn * 4 <= bytes_budget]
    if not fitting:
        fitting = [8]
    for tm in fitting:
        if tm <= m_total and m_total % tm == 0 and m_total // tm >= 2:
            return tm
    for tm in fitting:
        if tm <= m_total and m_total % tm == 0:
            return tm
    for tm in fitting:
        if tm <= m_total:
            return tm
    return fitting[-1]


@functools.partial(jax.jit, static_argnames=("kernel_size", "stride", "padding"))
def convkxk_forward(x_nchw, weight, bn_gamma, bn_beta, bn_mean, bn_var,
                    kernel_size=1, stride=1, padding=0, eps=1e-5):
    n, cin, h, w = x_nchw.shape
    cout = weight.shape[0]
    k = kernel_size

    # ---- BN folding (running stats): y = conv(x, W*scale) + bias ----
    scale = bn_gamma / jnp.sqrt(bn_var + eps)          # (Cout,)
    bias = bn_beta - bn_mean * scale                   # (Cout,)

    # ---- glue: layout (+ optional im2col), in bf16 to halve HBM traffic ----
    x_nhwc = jnp.transpose(x_nchw, (0, 2, 3, 1)).astype(jnp.bfloat16)

    if k == 1 and padding == 0:
        # 1x1 fast path: plain matmul over channels, no im2col / concatenate.
        xs = x_nhwc[:, ::stride, ::stride, :] if stride > 1 else x_nhwc
        oh, ow = xs.shape[1], xs.shape[2]
        kc = cin
        patches2d = xs.reshape(n * oh * ow, kc)
    else:
        patches, oh, ow = _extract_patches_nhwc(x_nhwc, k, stride, padding)
        kc = k * k * cin
        patches2d = patches.reshape(n * oh * ow, kc)

    # weight (Cout, Cin, K, K) -> (K, K, Cin, Cout) -> (K*K*Cin, Cout), fold BN
    # scale, pad Cout to a lane-dense multiple of 128, cast to bf16.
    w2d = jnp.transpose(weight, (2, 3, 1, 0)).reshape(kc, cout).astype(jnp.float32)
    w2d = w2d * scale[None, :].astype(jnp.float32)
    cout_pad = _round_up(cout, 128)
    if cout_pad != cout:
        w2d = jnp.pad(w2d, ((0, 0), (0, cout_pad - cout)))
    w2d_bf16 = w2d.astype(jnp.bfloat16)
    bias2d = jnp.pad(bias.astype(jnp.float32).reshape(1, cout),
                     ((0, 0), (0, cout_pad - cout)))

    # ---- tiling ----
    tn = 256 if (cout_pad % 256 == 0 and cout_pad >= 256) else 128
    m_total = n * oh * ow
    tm = _choose_tm(m_total, kc, tn)
    m_pad = _round_up(m_total, tm)
    if m_pad != m_total:
        # Only hit when no candidate tile divides M (ragged last block).
        patches2d = jnp.pad(patches2d, ((0, m_pad - m_total), (0, 0)))

    # ---- Pallas fused matmul + folded-BN bias + ReLU ----
    out2d = pl.pallas_call(
        _conv_bn_relu_kernel,
        out_shape=jax.ShapeDtypeStruct((m_pad, cout_pad), jnp.float32),
        grid_spec=pltpu.PrefetchScalarGridSpec(
            num_scalar_prefetch=0,
            grid=(m_pad // tm, cout_pad // tn),
            in_specs=[
                pl.BlockSpec((tm, kc), lambda i, j: (i, 0)),
                pl.BlockSpec((kc, tn), lambda i, j: (0, j)),
                pl.BlockSpec((1, tn), lambda i, j: (0, j)),
            ],
            out_specs=pl.BlockSpec((tm, tn), lambda i, j: (i, j)),
        ),
        compiler_params=pltpu.CompilerParams(
            dimension_semantics=("parallel", "parallel"),
            vmem_limit_bytes=32 * 1024 * 1024),
    )(patches2d, w2d_bf16, bias2d)

    out = out2d[:m_total, :cout].reshape(n, oh, ow, cout)
    return jnp.transpose(out, (0, 3, 1, 2))  # back to NCHW


def init_params(key, in_planes, out_planes, kernel_size):
    # Conv weight ~ N(0, sqrt(2 / (k*k*out_planes))); BN gamma=1, beta=0,
    # running_mean=0, running_var=1 (as in Convkxk.__init__).
    std = math.sqrt(2.0 / (kernel_size * kernel_size * out_planes))
    weight = std * jax.random.normal(
        key, (out_planes, in_planes, kernel_size, kernel_size), jnp.float32)
    gamma = jnp.ones((out_planes,), jnp.float32)
    beta = jnp.zeros((out_planes,), jnp.float32)
    mean = jnp.zeros((out_planes,), jnp.float32)
    var = jnp.ones((out_planes,), jnp.float32)
    return weight, gamma, beta, mean, var


def _reference(x, weight, gamma, beta, mean, var, k, stride, pad, eps=1e-5):
    """XLA reference using the same bf16-rounded operands as the kernel path."""
    scale = gamma / jnp.sqrt(var + eps)
    bias = beta - mean * scale
    w_folded = jnp.transpose(weight, (2, 3, 1, 0)) * scale          # (K,K,Cin,Cout)
    wq = w_folded.astype(jnp.bfloat16).astype(jnp.float32)
    wq_oihw = jnp.transpose(wq, (3, 2, 0, 1))
    xq = x.astype(jnp.bfloat16).astype(jnp.float32)
    conv = jax.lax.conv_general_dilated(
        xq, wq_oihw, (stride, stride), [(pad, pad), (pad, pad)],
        dimension_numbers=("NCHW", "OIHW", "NCHW"),
        precision=jax.lax.Precision.HIGHEST)
    return jnp.maximum(conv + bias[None, :, None, None], 0.0)


if __name__ == "__main__":
    key = jax.random.PRNGKey(0)
    k_x, k_w1, k_w2 = jax.random.split(key, 3)

    # Case 1: 3x3 conv, stride 1, pad 1 — batch=2, cin=4, cout=8, 16x16 spatial.
    N, CIN, H, W = 2, 4, 16, 16
    COUT, K, STRIDE, PAD = 8, 3, 1, 1
    x = jax.random.normal(k_x, (N, CIN, H, W), jnp.float32)

    w3, g3, b3, m3, v3 = init_params(k_w1, CIN, COUT, K)
    out3 = convkxk_forward(x, w3, g3, b3, m3, v3,
                           kernel_size=K, stride=STRIDE, padding=PAD)
    out3 = jax.block_until_ready(out3)
    ref3 = _reference(x, w3, g3, b3, m3, v3, K, STRIDE, PAD)
    assert out3.shape == (N, COUT, H, W)
    assert jnp.allclose(out3, ref3, atol=2e-3, rtol=2e-3), "3x3 mismatch vs reference"

    # Case 2: 1x1 conv fast path (no im2col).
    w1, g1, b1, m1, v1 = init_params(k_w2, CIN, COUT, 1)
    out1 = convkxk_forward(x, w1, g1, b1, m1, v1,
                           kernel_size=1, stride=1, padding=0)
    out1 = jax.block_until_ready(out1)
    ref1 = _reference(x, w1, g1, b1, m1, v1, 1, 1, 0)
    assert out1.shape == (N, COUT, H, W)
    assert jnp.allclose(out1, ref1, atol=2e-3, rtol=2e-3), "1x1 mismatch vs reference"

    print("KERNEL_OK")
</pallas_src>

<mosaic_0001>
module attributes {stable_mosaic.version = 11 : i64} {
  func.func @_conv_bn_relu_kernel(%arg0: i32, %arg1: i32, %arg2: memref<256x36xbf16, #tpu.memory_space<vmem>>, %arg3: memref<36x128xbf16, #tpu.memory_space<vmem>>, %arg4: memref<1x128xf32, #tpu.memory_space<vmem>>, %arg5: memref<256x128xf32, #tpu.memory_space<vmem>>) attributes {dimension_semantics = [#tpu.dimension_semantics<parallel>, #tpu.dimension_semantics<parallel>], iteration_bounds = array<i64: 2, 1>, scalar_prefetch = 0 : i64, scratch_operands = 0 : i64, tpu.core_type = #tpu.core_type<tc>, window_params = [{transform_indices = @transform_0, window_bounds = array<i64: 256, 36>}, {transform_indices = @transform_1, window_bounds = array<i64: 36, 128>}, {transform_indices = @transform_2, window_bounds = array<i64: 1, 128>}, {transform_indices = @transform_3, window_bounds = array<i64: 256, 128>}]} {
    %c0 = arith.constant 0 : index
    %c0_0 = arith.constant 0 : index
    %0 = vector.load %arg2[%c0, %c0_0] : memref<256x36xbf16, #tpu.memory_space<vmem>>, vector<256x36xbf16>
    %c0_1 = arith.constant 0 : index
    %c0_2 = arith.constant 0 : index
    %1 = vector.load %arg3[%c0_1, %c0_2] : memref<36x128xbf16, #tpu.memory_space<vmem>>, vector<36x128xbf16>
    %cst = arith.constant dense<0.000000e+00> : vector<256x128xf32>
    %2 = tpu.matmul %0, %1, %cst {dimension_numbers = #tpu.dot_dimension_numbers<[1], [0], [0], [1], [0, 0, 1, 1], [], []>} : vector<256x36xbf16>, vector<36x128xbf16>, vector<256x128xf32> -> vector<256x128xf32>
    %c0_3 = arith.constant 0 : index
    %c0_4 = arith.constant 0 : index
    %3 = vector.load %arg4[%c0_3, %c0_4] : memref<1x128xf32, #tpu.memory_space<vmem>>, vector<1x128xf32>
    %4 = vector.broadcast %3 : vector<1x128xf32> to vector<256x128xf32>
    %5 = arith.addf %2, %4 : vector<256x128xf32>
    %cst_5 = arith.constant 0.000000e+00 : f32
    %6 = vector.broadcast %cst_5 : f32 to vector<256x128xf32>
    %7 = arith.maximumf %5, %6 : vector<256x128xf32>
    %c0_6 = arith.constant 0 : index
    %c0_7 = arith.constant 0 : index
    %8 = vector.load %arg5[%c0_6, %c0_7] : memref<256x128xf32, #tpu.memory_space<vmem>>, vector<256x128xf32>
    tpu.vector_store %arg5[%c0_6, %c0_7], %7 {strides = array<i32>} : memref<256x128xf32, #tpu.memory_space<vmem>>, vector<256x128xf32>,
    return
  }
  func.func @transform_0(%arg0: i32, %arg1: i32) -> (i32, i32) {
    %c0_i32 = arith.constant 0 : i32
    %c0_i32_0 = arith.constant 0 : i32
    return %arg0, %c0_i32 : i32, i32
  }
  func.func @transform_1(%arg0: i32, %arg1: i32) -> (i32, i32) {
    %c0_i32 = arith.constant 0 : i32
    %c0_i32_0 = arith.constant 0 : i32
    return %c0_i32, %arg1 : i32, i32
  }
  func.func @transform_2(%arg0: i32, %arg1: i32) -> (i32, i32) {
    %c0_i32 = arith.constant 0 : i32
    %c0_i32_0 = arith.constant 0 : i32
    return %c0_i32, %arg1 : i32, i32
  }
  func.func @transform_3(%arg0: i32, %arg1: i32) -> (i32, i32) {
    %c0_i32 = arith.constant 0 : i32
    return %arg0, %arg1 : i32, i32
  }
}

</mosaic_0001>

<llo_original>
// kernel: convkxk_forward.1
$region0: #{convkxk_forward.1}
  #allocation0 [shape = 'u32[]', space=smem, size = 0x4, offset = 0x4, fixed_abs, tag = 'smem constant byte address 0x4 - core index']
  #allocation1 [shape = 'u32[72,128]{1,0:T(1,128)}', space=vmem, size = 0x9000, scoped, tag = 'internal scratch']
  %s0 = inlined_call_operand.vmem [shape: bf16[512,36], index: 0, kind: input, shape index: {}]
  %s1 = inlined_call_operand.vmem [shape: bf16[36,128], index: 1, kind: input, shape index: {}]
  %s2 = inlined_call_operand.vmem [shape: f32[1,128], index: 2, kind: input, shape index: {}]
  %s3 = inlined_call_operand.vmem [shape: f32[512,128], index: 3, kind: output, shape index: {}]
  %s4 = sld [smem:[#allocation0]]
  $region45: #{convkxk_forward.1} parent=0
    _
  %s6 = ssub.s32 1, %s4
  %s7 = scalar_select 0, %s6, %s4
  loop: start=0, step=1, limit=4
  $region2: #{convkxk_forward.1} parent=0 // loop_pre_header
    _
  $region3: #{convkxk_forward.1} parent=0 // loop_header
    %s9 = sphi 0, %s13
    %p10 = scmp.ge.s32.totalorder %s9, 4
    %s16 = sphi 0, %s28
    %s17 = sphi 0, %s24
    %s18 = sphi 0, %s16
    %s19 = sphi 0, %s17
    %s20 = sphi 0, %s18
    %s21 = sphi 0, %s19
    %s31 = sphi 0, %s33
    %s34 = sphi 0, %s31
    %s35 = sphi 0, %s34
    %s51 = sphi 0, %s35
    %s57 = sphi 0, %s59
    %s60 = sphi 0, %s57
    %s61 = sphi 0, %s60
    %s77 = sphi 0, %s61
    %s83 = sphi 0, %s85
    %s86 = sphi 0, %s83
    %s87 = sphi 0, %s86
    %s103 = sphi 0, %s87
    %s111 = sphi 0, %s113
    %s114 = sphi 0, %s111
    %s115 = sphi 0, %s114
    %s131 = sphi 0, %s115
  $region4: #{convkxk_forward.1} parent=0 // loop_header_branch
    %12 = sbr.rel (%p10) target = $region8
  $region5: #{convkxk_forward.1} parent=0 // loop_body
    %s14 = ssub.s32 %s9, 1
    %s15 = ssub.s32 %s9, 2
    %s22 = sadd.s32 1, %s17
    %p23 = scmp.ge.s32.totalorder %s22, 1
    %s24 = scalar_select %p23, 0, %s22
    %s25 = sadd.s32 1, %s16
    %s26 = scalar_select %p23, %s25, %s16
    %p27 = scmp.ge.s32.totalorder %s26, 2
    %s28 = scalar_select %p27, 0, %s26
    %s29 = ssub.s32 %s16, %s28
    %p30 = scmp.eq.s32.totalorder %s29, 0
    %s32 = sadd.s32 %s31, 1
    %s33 = scalar_select %p30, %s31, %s32
    %p36 = pneg %p30
    %p37 = scmp.eq.s32.totalorder %s9, 1
    %p38 = por %p36, %p37
    %p39 = scmp.ne.s32.totalorder %s31, %s34
    %p40 = scmp.eq.s32.totalorder %s9, 0
    %p41 = por %p39, %p40
    %p42 = scmp.ne.s32.totalorder %s31, %s34
    %p43 = scmp.eq.s32.totalorder %s14, 1
    %p44 = por %p42, %p43
    %p45 = scmp.ne.s32.totalorder %s34, %s35
    %p46 = scmp.eq.s32.totalorder %s14, 0
    %p47 = por %p45, %p46
    %p48 = scmp.ne.s32.totalorder %s34, %s35
    %p49 = scmp.eq.s32.totalorder %s15, 1
    %p50 = por %p48, %p49
    %p52 = scmp.ne.s32.totalorder %s35, %s51
    %p53 = scmp.eq.s32.totalorder %s15, 0
    %p54 = por %p52, %p53
    %s55 = ssub.s32 %s17, %s24
    %p56 = scmp.eq.s32.totalorder %s55, 0
    %s58 = sadd.s32 %s57, 1
    %s59 = scalar_select %p56, %s57, %s58
    %p62 = pneg %p56
    %p63 = scmp.eq.s32.totalorder %s9, 1
    %p64 = por %p62, %p63
    %p65 = scmp.ne.s32.totalorder %s57, %s60
    %p66 = scmp.eq.s32.totalorder %s9, 0
    %p67 = por %p65, %p66
    %p68 = scmp.ne.s32.totalorder %s57, %s60
    %p69 = scmp.eq.s32.totalorder %s14, 1
    %p70 = por %p68, %p69
    %p71 = scmp.ne.s32.totalorder %s60, %s61
    %p72 = scmp.eq.s32.totalorder %s14, 0
    %p73 = por %p71, %p72
    %p74 = scmp.ne.s32.totalorder %s60, %s61
    %p75 = scmp.eq.s32.totalorder %s15, 1
    %p76 = por %p74, %p75
    %p78 = scmp.ne.s32.totalorder %s61, %s77
    %p79 = scmp.eq.s32.totalorder %s15, 0
    %p80 = por %p78, %p79
    %s81 = ssub.s32 %s17, %s24
    %p82 = scmp.eq.s32.totalorder %s81, 0
    %s84 = sadd.s32 %s83, 1
    %s85 = scalar_select %p82, %s83, %s84
    %p88 = pneg %p82
    %p89 = scmp.eq.s32.totalorder %s9, 1
    %p90 = por %p88, %p89
    %p91 = scmp.ne.s32.totalorder %s83, %s86
    %p92 = scmp.eq.s32.totalorder %s9, 0
    %p93 = por %p91, %p92
    %p94 = scmp.ne.s32.totalorder %s83, %s86
    %p95 = scmp.eq.s32.totalorder %s14, 1
    %p96 = por %p94, %p95
    %p97 = scmp.ne.s32.totalorder %s86, %s87
    %p98 = scmp.eq.s32.totalorder %s14, 0
    %p99 = por %p97, %p98
    %p100 = scmp.ne.s32.totalorder %s86, %s87
    %p101 = scmp.eq.s32.totalorder %s15, 1
    %p102 = por %p100, %p101
    %p104 = scmp.ne.s32.totalorder %s87, %s103
    %p105 = scmp.eq.s32.totalorder %s15, 0
    %p106 = por %p104, %p105
    %s107 = ssub.s32 %s16, %s28
    %s108 = ssub.s32 %s17, %s24
    %s109 = sor.u32 %s107, %s108
    %p110 = scmp.eq.s32.totalorder %s109, 0
    %s112 = sadd.s32 %s111, 1
    %s113 = scalar_select %p110, %s111, %s112
    %p116 = pneg %p110
    %p117 = scmp.eq.s32.totalorder %s9, 1
    %p118 = por %p116, %p117
    %p119 = scmp.ne.s32.totalorder %s111, %s114
    %p120 = scmp.eq.s32.totalorder %s9, 0
    %p121 = por %p119, %p120
    %p122 = scmp.ne.s32.totalorder %s111, %s114
    %p123 = scmp.eq.s32.totalorder %s14, 1
    %p124 = por %p122, %p123
    %p125 = scmp.ne.s32.totalorder %s114, %s115
    %p126 = scmp.eq.s32.totalorder %s14, 0
    %p127 = por %p125, %p126
    %p128 = scmp.ne.s32.totalorder %s114, %s115
    %p129 = scmp.eq.s32.totalorder %s15, 1
    %p130 = por %p128, %p129
    %p132 = scmp.ne.s32.totalorder %s115, %s131
    %p133 = scmp.eq.s32.totalorder %s15, 0
    %p134 = por %p132, %p133
    %p135 = scmp.le.s32.totalorder 1, %s9
    %p136 = scmp.lt.s32.totalorder %s9, 3
    %p137 = pnand %p135, %p136
    %p138 = pneg %p137
    // Predicated region
    $region9: #{convkxk_forward.1} parent=5 // pred_check
      _
    $region10: #{convkxk_forward.1} parent=5 // pred_check_branch
      %140 = sbr.rel (%p137) target = $region12
    $region11: #{convkxk_forward.1} parent=5 // pred_region
      %s141 = ssub.s32 %s9, 1
      // Predicated region
      $region13: #{convkxk_forward.1} parent=11 // pred_check
        %p142 = pneg %p73
      $region14: #{convkxk_forward.1} parent=11 // pred_check_branch
        %144 = sbr.rel (%p142) target = $region16
      $region15: #{convkxk_forward.1} parent=11 // pred_region
        %p145 = scmp.lt.s32.totalorder %s19, 0
        %s146 = scalar_select %p145, %s19, 0
        %s147 = smul.addr %s146, 4
        %s148 = scalar_lea.vmem %s1, %s147
      $region16: #{convkxk_forward.1} parent=11 // pred_fallthru
        _
      // Predicated region
      $region17: #{convkxk_forward.1} parent=11 // pred_check
        %p149 = pneg %p99
      $region18: #{convkxk_forward.1} parent=11 // pred_check_branch
        %151 = sbr.rel (%p149) target = $region20
      $region19: #{convkxk_forward.1} parent=11 // pred_region
        %p152 = scmp.lt.s32.totalorder %s19, 0
        %s153 = scalar_select %p152, %s19, 0
        %s154 = scalar_lea.vmem %s2, %s153
      $region20: #{convkxk_forward.1} parent=11 // pred_fallthru
        _
    $region12: #{convkxk_forward.1} parent=5 // pred_fallthru
      _
    %p155 = scmp.lt.s32.totalorder %s9, 2
    // Predicated region
    $region21: #{convkxk_forward.1} parent=5 // pred_check
      %p156 = pneg %p155
    $region22: #{convkxk_forward.1} parent=5 // pred_check_branch
      %158 = sbr.rel (%p156) target = $region24
    $region23: #{convkxk_forward.1} parent=5 // pred_region
      // Predicated region
      $region25: #{convkxk_forward.1} parent=23 // pred_check
        %p159 = pneg %p41
      $region26: #{convkxk_forward.1} parent=23 // pred_check_branch
        %161 = sbr.rel (%p159) target = $region28
      $region27: #{convkxk_forward.1} parent=23 // pred_region
        %s162 = smul.u32 32, %s16
        %p163 = scmp.lt.s32.totalorder %s162, 63
        %s164 = scalar_select %p163, %s162, 63
        %s165 = smul.addr %s164, 4
        %s166 = scalar_lea.vmem %s0, %s165
        %s167 = smul.u32 32, %s16
      $region28: #{convkxk_forward.1} parent=23 // pred_fallthru
        _
    $region24: #{convkxk_forward.1} parent=5 // pred_fallthru
      _
    %p168 = scmp.le.s32.totalorder 1, %s9
    %p169 = scmp.lt.s32.totalorder %s9, 3
    %p170 = pnand %p168, %p169
    %p171 = pneg %p170
    // Predicated region
    $region29: #{convkxk_forward.1} parent=5 // pred_check
      _
    $region30: #{convkxk_forward.1} parent=5 // pred_check_branch
      %173 = sbr.rel (%p170) target = $region32
    $region31: #{convkxk_forward.1} parent=5 // pred_region
      %s174 = ssub.s32 %s9, 1
      %s175 = smul.u32 32, %s18
      %p176 = scmp.lt.s32.totalorder %s175, 63
      %s177 = scalar_select %p176, %s175, 63
      %s178 = smul.addr %s177, 4
      %s179 = scalar_lea.vmem %s0, %s178
      %p180 = pneg %p47
      %p181 = pneg %p44
      %p182 = scmp.lt.s32.totalorder %s19, 0
      %s183 = scalar_select %p182, %s19, 0
      %s184 = smul.addr %s183, 4
      %s185 = scalar_lea.vmem %s1, %s184
      %p186 = pneg %p73
      %p187 = pneg %p70
      %p188 = scmp.lt.s32.totalorder %s19, 0
      %s189 = scalar_select %p188, %s19, 0
      %s190 = scalar_lea.vmem %s2, %s189
      %p191 = pneg %p99
      %p192 = pneg %p96
      %p193 = pneg %p127
      %p194 = pneg %p124
      %s195 = smul.u32 32, %s18
      %p196 = scmp.lt.s32.totalorder %s195, 63
      %s197 = scalar_select %p196, %s195, 63
      %p198 = scmp.lt.s32.totalorder %s19, 0
      %s199 = scalar_select %p198, %s19, 0
      %s200 = sadd.s32 %s199, %s197
      %s201 = smul.addr %s200, 8
      %s202 = scalar_lea.vmem %s3, %s201
      %s203 = smul.u32 32, %s18
      %p204 = scmp.lt.s32.totalorder %s203, 63
      %s205 = scalar_select %p204, %s203, 63
      %s206 = smul.addr %s205, 4
      %s207 = scalar_lea.vmem %s0, %s206
      %s208 = smul.u32 32, %s18
      %p209 = scmp.lt.s32.totalorder %s19, 0
      %s210 = scalar_select %p209, %s19, 0
      %s211 = smul.addr %s210, 4
      %s212 = scalar_lea.vmem %s1, %s211
      %p213 = scmp.lt.s32.totalorder %s19, 0
      %s214 = scalar_select %p213, %s19, 0
      %s215 = scalar_lea.vmem %s2, %s214
      %s216 = smul.u32 32, %s18
      %p217 = scmp.lt.s32.totalorder %s216, 63
      %s218 = scalar_select %p217, %s216, 63
      %p219 = scmp.lt.s32.totalorder %s19, 0
      %s220 = scalar_select %p219, %s19, 0
      %s221 = sadd.s32 %s220, %s218
      %s222 = smul.addr %s221, 8
      %s223 = scalar_lea.vmem %s3, %s222
      %s224 = smul.u32 32, %s18
      %v226 = vld [vmem:[%s207] sm:$0xf]
      %v227 = vld [vmem:[%s207 + $0x4] sm:$0xf]
      %v228 = vld [vmem:[%s207 + $0x8] sm:$0xf]
      %v229 = vld [vmem:[%s207 + $0xc] sm:$0xf]
      %v230 = vld [vmem:[%s207 + $0x10] sm:$0xf]
      %v231 = vld [vmem:[%s207 + $0x14] sm:$0xf]
      %v232 = vld [vmem:[%s207 + $0x18] sm:$0xf]
      %v233 = vld [vmem:[%s207 + $0x1c] sm:$0xf]
      %v234 = vld [vmem:[%s207 + $0x20] sm:$0xf]
      %v235 = vld [vmem:[%s207 + $0x24] sm:$0xf]
      %v236 = vld [vmem:[%s207 + $0x28] sm:$0xf]
      %v237 = vld [vmem:[%s207 + $0x2c] sm:$0xf]
      %v238 = vld [vmem:[%s207 + $0x30] sm:$0xf]
      %v239 = vld [vmem:[%s207 + $0x34] sm:$0xf]
      %v240 = vld [vmem:[%s207 + $0x38] sm:$0xf]
      %v241 = vld [vmem:[%s207 + $0x3c] sm:$0xf]
      %v242 = vld [vmem:[%s207 + $0x40] sm:$0xf]
      %v243 = vld [vmem:[%s207 + $0x44] sm:$0xf]
      %v244 = vld [vmem:[%s207 + $0x48] sm:$0xf]
      %v245 = vld [vmem:[%s207 + $0x4c] sm:$0xf]
      %v246 = vld [vmem:[%s207 + $0x50] sm:$0xf]
      %v247 = vld [vmem:[%s207 + $0x54] sm:$0xf]
      %v248 = vld [vmem:[%s207 + $0x58] sm:$0xf]
      %v249 = vld [vmem:[%s207 + $0x5c] sm:$0xf]
      %v250 = vld [vmem:[%s207 + $0x60] sm:$0xf]
      %v251 = vld [vmem:[%s207 + $0x64] sm:$0xf]
      %v252 = vld [vmem:[%s207 + $0x68] sm:$0xf]
      %v253 = vld [vmem:[%s207 + $0x6c] sm:$0xf]
      %v254 = vld [vmem:[%s207 + $0x70] sm:$0xf]
      %v255 = vld [vmem:[%s207 + $0x74] sm:$0xf]
      %v256 = vld [vmem:[%s207 + $0x78] sm:$0xf]
      %v257 = vld [vmem:[%s207 + $0x7c] sm:$0xf]
      %v258 = vld [vmem:[%s212] sm:$0xf]
      %v259 = vld [vmem:[%s212 + $0x4] sm:$0xf]
      %v260 = vld [vmem:[%s212 + $0x8] sm:$0xf]
      %v261 = vld [vmem:[%s212 + $0xc] sm:$0xf]
      %v262 = vld [vmem:[%s212 + $0x10] sm:$0x3]
      %v263 = vld [vmem:[%s215] sm:$0x1]
      %v265 = vperm.slane %v263, 0
      %v299 = vunpack.c.l.b16 %v226
      %v300 = vunpack.c.l.b16 %v227
      %v301 = vunpack.c.l.b16 %v228
      %v302 = vunpack.c.l.b16 %v229
      %v303 = vunpack.c.l.b16 %v230
      %v304 = vunpack.c.l.b16 %v231
      %v305 = vunpack.c.l.b16 %v232
      %v306 = vunpack.c.l.b16 %v233
      %v307 = vunpack.c.l.b16 %v234
      %v308 = vunpack.c.l.b16 %v235
      %v309 = vunpack.c.l.b16 %v236
      %v310 = vunpack.c.l.b16 %v237
      %v311 = vunpack.c.l.b16 %v238
      %v312 = vunpack.c.l.b16 %v239
      %v313 = vunpack.c.l.b16 %v240
      %v314 = vunpack.c.l.b16 %v241
      %v315 = vunpack.c.l.b16 %v242
      %v316 = vunpack.c.l.b16 %v243
      %v317 = vunpack.c.l.b16 %v244
      %v318 = vunpack.c.l.b16 %v245
      %v319 = vunpack.c.l.b16 %v246
      %v320 = vunpack.c.l.b16 %v247
      %v321 = vunpack.c.l.b16 %v248
      %v322 = vunpack.c.l.b16 %v249
      %v323 = vunpack.c.l.b16 %v250
      %v324 = vunpack.c.l.b16 %v251
      %v325 = vunpack.c.l.b16 %v252
      %v326 = vunpack.c.l.b16 %v253
      %v327 = vunpack.c.l.b16 %v254
      %v328 = vunpack.c.l.b16 %v255
      %v329 = vunpack.c.l.b16 %v256
      %v330 = vunpack.c.l.b16 %v257
      %v331 = vpack.c.b16 %v300, %v299
      %v332 = vpack.c.b16 %v302, %v301
      %v333 = vpack.c.b16 %v304, %v303
      %v334 = vpack.c.b16 %v306, %v305
      %v335 = vpack.c.b16 %v308, %v307
      %v336 = vpack.c.b16 %v310, %v309
      %v337 = vpack.c.b16 %v312, %v311
      %v338 = vpack.c.b16 %v314, %v313
      %v339 = vpack.c.b16 %v316, %v315
      %v340 = vpack.c.b16 %v318, %v317
      %v341 = vpack.c.b16 %v320, %v319
      %v342 = vpack.c.b16 %v322, %v321
      %v343 = vpack.c.b16 %v324, %v323
      %v344 = vpack.c.b16 %v326, %v325
      %v345 = vpack.c.b16 %v328, %v327
      %v346 = vpack.c.b16 %v330, %v329
      %v352 = vunpack.c.l.b16 %v258
      %v353 = vunpack.c.l.b16 %v259
      %v354 = vunpack.c.l.b16 %v260
      %v355 = vunpack.c.l.b16 %v261
      %v356 = vunpack.c.l.b16 %v262
      %v357 = vpack.c.b16 %v353, %v352
      %v358 = vpack.c.b16 %v355, %v354
      %v359 = vpack.c.b16 %v356, %v356
      %vm362 = vcmask 293888
      %v364 = vsel %vm362, %v331, 0
      %v367 = vsel %vm362, %v332, 0
      %v370 = vsel %vm362, %v333, 0
      %v373 = vsel %vm362, %v334, 0
      %v376 = vsel %vm362, %v335, 0
      %v379 = vsel %vm362, %v336, 0
      %v382 = vsel %vm362, %v337, 0
      %v385 = vsel %vm362, %v338, 0
      %v388 = vsel %vm362, %v339, 0
      %v391 = vsel %vm362, %v340, 0
      %v394 = vsel %vm362, %v341, 0
      %v397 = vsel %vm362, %v342, 0
      %v400 = vsel %vm362, %v343, 0
      %v403 = vsel %vm362, %v344, 0
      %v406 = vsel %vm362, %v345, 0
      %v409 = vsel %vm362, %v346, 0
      %vm411 = vcmask 1041408
      %v413 = vsel %vm411, %v359, 0
      %415 = vmatpush.bf16.msra.mxu0 0
      %416 = vmatpush.bf16.msra.mxu0 0
      %417 = vmatpush.bf16.msra.mxu0 0
      %418 = vmatpush.bf16.msra.mxu0 0
      %419 = vmatpush.bf16.msra.mxu0 0
      %420 = vmatpush.bf16.msra.mxu0 %v413
      %421 = vmatpush.bf16.msra.mxu0 %v358
      %422 = vmatpush.bf16.msra.mxu0 %v357
      %423 = vmatmul.bf16.gmra.mxu0 %v364
      %v424 = vpop.f32.mrf.mxu0
      %v425 = vadd.f32 %v265, %v424
      %v426 = vpop.f32.mrf.mxu0
      %v427 = vadd.f32 %v265, %v426
      %428 = vmatmul.bf16.gmra.mxu0 %v367
      %v429 = vpop.f32.mrf.mxu0
      %v430 = vadd.f32 %v265, %v429
      %v431 = vpop.f32.mrf.mxu0
      %v432 = vadd.f32 %v265, %v431
      %433 = vmatmul.bf16.gmra.mxu0 %v370
      %v434 = vpop.f32.mrf.mxu0
      %v435 = vadd.f32 %v265, %v434
      %v436 = vpop.f32.mrf.mxu0
      %v437 = vadd.f32 %v265, %v436
      %438 = vmatmul.bf16.gmra.mxu0 %v373
      %v439 = vpop.f32.mrf.mxu0
      %v440 = vadd.f32 %v265, %v439
      %v441 = vpop.f32.mrf.mxu0
      %v442 = vadd.f32 %v265, %v441
      %443 = vmatmul.bf16.gmra.mxu0 %v376
      %v444 = vpop.f32.mrf.mxu0
      %v445 = vadd.f32 %v265, %v444
      %v446 = vpop.f32.mrf.mxu0
      %v447 = vadd.f32 %v265, %v446
      %448 = vmatmul.bf16.gmra.mxu0 %v379
      %v449 = vpop.f32.mrf.mxu0
      %v450 = vadd.f32 %v265, %v449
      %v451 = vpop.f32.mrf.mxu0
      %v452 = vadd.f32 %v265, %v451
      %453 = vmatmul.bf16.gmra.mxu0 %v382
      %v454 = vpop.f32.mrf.mxu0
      %v455 = vadd.f32 %v265, %v454
      %v456 = vpop.f32.mrf.mxu0
      %v457 = vadd.f32 %v265, %v456
      %458 = vmatmul.bf16.gmra.mxu0 %v385
      %v459 = vpop.f32.mrf.mxu0
      %v460 = vadd.f32 %v265, %v459
      %v461 = vpop.f32.mrf.mxu0
      %v462 = vadd.f32 %v265, %v461
      %463 = vmatmul.bf16.gmra.mxu0 %v388
      %v464 = vpop.f32.mrf.mxu0
      %v465 = vadd.f32 %v265, %v464
      %v466 = vpop.f32.mrf.mxu0
      %v467 = vadd.f32 %v265, %v466
      %468 = vmatmul.bf16.gmra.mxu0 %v391
      %v469 = vpop.f32.mrf.mxu0
      %v470 = vadd.f32 %v265, %v469
      %v471 = vpop.f32.mrf.mxu0
      %v472 = vadd.f32 %v265, %v471
      %473 = vmatmul.bf16.gmra.mxu0 %v394
      %v474 = vpop.f32.mrf.mxu0
      %v475 = vadd.f32 %v265, %v474
      %v476 = vpop.f32.mrf.mxu0
      %v477 = vadd.f32 %v265, %v476
      %478 = vmatmul.bf16.gmra.mxu0 %v397
      %v479 = vpop.f32.mrf.mxu0
      %v480 = vadd.f32 %v265, %v479
      %v481 = vpop.f32.mrf.mxu0
      %v482 = vadd.f32 %v265, %v481
      %483 = vmatmul.bf16.gmra.mxu0 %v400
      %v484 = vpop.f32.mrf.mxu0
      %v485 = vadd.f32 %v265, %v484
      %v486 = vpop.f32.mrf.mxu0
      %v487 = vadd.f32 %v265, %v486
      %488 = vmatmul.bf16.gmra.mxu0 %v403
      %v489 = vpop.f32.mrf.mxu0
      %v490 = vadd.f32 %v265, %v489
      %v491 = vpop.f32.mrf.mxu0
      %v492 = vadd.f32 %v265, %v491
      %493 = vmatmul.bf16.gmra.mxu0 %v406
      %v494 = vpop.f32.mrf.mxu0
      %v495 = vadd.f32 %v265, %v494
      %v496 = vpop.f32.mrf.mxu0
      %v497 = vadd.f32 %v265, %v496
      %498 = vmatmul.bf16.gmra.mxu0 %v409
      %v499 = vpop.f32.mrf.mxu0
      %v500 = vadd.f32 %v265, %v499
      %v501 = vpop.f32.mrf.mxu0
      %v502 = vadd.f32 %v265, %v501
      %503 = vdwg.mxu0
      %v504 = vmax.f32 %v425, 0.0
      %v505 = vmax.f32 %v427, 0.0
      %v506 = vmax.f32 %v430, 0.0
      %v507 = vmax.f32 %v432, 0.0
      %v508 = vmax.f32 %v435, 0.0
      %v509 = vmax.f32 %v437, 0.0
      %v510 = vmax.f32 %v440, 0.0
      %v511 = vmax.f32 %v442, 0.0
      %v512 = vmax.f32 %v445, 0.0
      %v513 = vmax.f32 %v447, 0.0
      %v514 = vmax.f32 %v450, 0.0
      %v515 = vmax.f32 %v452, 0.0
      %v516 = vmax.f32 %v455, 0.0
      %v517 = vmax.f32 %v457, 0.0
      %v518 = vmax.f32 %v460, 0.0
      %v519 = vmax.f32 %v462, 0.0
      %v520 = vmax.f32 %v465, 0.0
      %v521 = vmax.f32 %v467, 0.0
      %v522 = vmax.f32 %v470, 0.0
      %v523 = vmax.f32 %v472, 0.0
      %v524 = vmax.f32 %v475, 0.0
      %v525 = vmax.f32 %v477, 0.0
      %v526 = vmax.f32 %v480, 0.0
      %v527 = vmax.f32 %v482, 0.0
      %v528 = vmax.f32 %v485, 0.0
      %v529 = vmax.f32 %v487, 0.0
      %v530 = vmax.f32 %v490, 0.0
      %v531 = vmax.f32 %v492, 0.0
      %v532 = vmax.f32 %v495, 0.0
      %v533 = vmax.f32 %v497, 0.0
      %v534 = vmax.f32 %v500, 0.0
      %v535 = vmax.f32 %v502, 0.0
      %536 = vst [vmem:[%s223] sm:$0xff] %v504
      %537 = vst [vmem:[%s223 + $0x8] sm:$0xff] %v505
      %538 = vst [vmem:[%s223 + $0x10] sm:$0xff] %v506
      %539 = vst [vmem:[%s223 + $0x18] sm:$0xff] %v507
      %540 = vst [vmem:[%s223 + $0x20] sm:$0xff] %v508
      %541 = vst [vmem:[%s223 + $0x28] sm:$0xff] %v509
      %542 = vst [vmem:[%s223 + $0x30] sm:$0xff] %v510
      %543 = vst [vmem:[%s223 + $0x38] sm:$0xff] %v511
      %544 = vst [vmem:[%s223 + $0x40] sm:$0xff] %v512
      %545 = vst [vmem:[%s223 + $0x48] sm:$0xff] %v513
      %546 = vst [vmem:[%s223 + $0x50] sm:$0xff] %v514
      %547 = vst [vmem:[%s223 + $0x58] sm:$0xff] %v515
      %548 = vst [vmem:[%s223 + $0x60] sm:$0xff] %v516
      %549 = vst [vmem:[%s223 + $0x68] sm:$0xff] %v517
      %550 = vst [vmem:[%s223 + $0x70] sm:$0xff] %v518
      %551 = vst [vmem:[%s223 + $0x78] sm:$0xff] %v519
      %552 = vst [vmem:[%s223 + $0x80] sm:$0xff] %v520
      %553 = vst [vmem:[%s223 + $0x88] sm:$0xff] %v521
      %554 = vst [vmem:[%s223 + $0x90] sm:$0xff] %v522
      %555 = vst [vmem:[%s223 + $0x98] sm:$0xff] %v523
      %556 = vst [vmem:[%s223 + $0xa0] sm:$0xff] %v524
      %557 = vst [vmem:[%s223 + $0xa8] sm:$0xff] %v525
      %558 = vst [vmem:[%s223 + $0xb0] sm:$0xff] %v526
      %559 = vst [vmem:[%s223 + $0xb8] sm:$0xff] %v527
      %560 = vst [vmem:[%s223 + $0xc0] sm:$0xff] %v528
      %561 = vst [vmem:[%s223 + $0xc8] sm:$0xff] %v529
      %562 = vst [vmem:[%s223 + $0xd0] sm:$0xff] %v530
      %563 = vst [vmem:[%s223 + $0xd8] sm:$0xff] %v531
      %564 = vst [vmem:[%s223 + $0xe0] sm:$0xff] %v532
      %565 = vst [vmem:[%s223 + $0xe8] sm:$0xff] %v533
      %566 = vst [vmem:[%s223 + $0xf0] sm:$0xff] %v534
      %567 = vst [vmem:[%s223 + $0xf8] sm:$0xff] %v535
      %s568 = smul.u32 32, %s18
      %p569 = scmp.lt.s32.totalorder %s568, 63
      %s570 = scalar_select %p569, %s568, 63
      %p571 = scmp.lt.s32.totalorder %s19, 0
      %s572 = scalar_select %p571, %s19, 0
      %s573 = sadd.s32 %s572, %s570
      %s574 = smul.addr %s573, 8
      %s575 = scalar_lea.vmem %s3, %s574
      // Predicated region
      $region33: #{convkxk_forward.1} parent=31 // pred_check
        %p576 = pneg %p124
      $region34: #{convkxk_forward.1} parent=31 // pred_check_branch
        %578 = sbr.rel (%p576) target = $region36
      $region35: #{convkxk_forward.1} parent=31 // pred_region
        %s579 = smul.u32 32, %s18
      $region36: #{convkxk_forward.1} parent=31 // pred_fallthru
        _
    $region32: #{convkxk_forward.1} parent=5 // pred_fallthru
      _
    %p580 = scmp.le.s32.totalorder 2, %s9
    // Predicated region
    $region37: #{convkxk_forward.1} parent=5 // pred_check
      %p581 = pneg %p580
    $region38: #{convkxk_forward.1} parent=5 // pred_check_branch
      %583 = sbr.rel (%p581) target = $region40
    $region39: #{convkxk_forward.1} parent=5 // pred_region
      %s584 = ssub.s32 %s9, 2
      // Predicated region
      $region41: #{convkxk_forward.1} parent=39 // pred_check
        %p585 = pneg %p130
      $region42: #{convkxk_forward.1} parent=39 // pred_check_branch
        %587 = sbr.rel (%p585) target = $region44
      $region43: #{convkxk_forward.1} parent=39 // pred_region
        %s588 = smul.u32 32, %s20
        %p589 = scmp.lt.s32.totalorder %s588, 63
        %s590 = scalar_select %p589, %s588, 63
        %p591 = scmp.lt.s32.totalorder %s21, 0
        %s592 = scalar_select %p591, %s21, 0
        %s593 = sadd.s32 %s592, %s590
        %s594 = smul.addr %s593, 8
        %s595 = scalar_lea.vmem %s3, %s594
      $region44: #{convkxk_forward.1} parent=39 // pred_fallthru
        _
    $region40: #{convkxk_forward.1} parent=5 // pred_fallthru
      _
  $region6: #{convkxk_forward.1} parent=0 // loop_footer
    %s13 = sadd.s32 1, %s9
  $region7: #{convkxk_forward.1} parent=0 // loop_footer_branch
    %8 = sbr.rel target = $region3
  $region8: #{convkxk_forward.1} parent=0 // loop_exit
    _

</llo_original>
